<compile_context>
chip_gen: v5e
topology: v5e:2x2
jax: 0.10.0
libtpu: 0.0.40
codegen_flags: <defaults>
</compile_context>

<pallas_src>
import jax
import jax.numpy as jnp
import numpy as np
from jax.experimental import pallas as pl
from jax.experimental.pallas import tpu as pltpu


# ----------------------------- Pallas kernel -------------------------------- #
def _attention_kernel(bp_ref,                 # SMEM scalar prefetch: (1,) f32
                      gate_ref, into_ref,     # (Cg, TP), (Ci, TP)
                      wg_ref, wi_ref,         # (Cm, Cg), (Cm, Ci)
                      bgi_ref,                # (Cm, 1)   = bg + bi (BN folded)
                      wp_ref,                 # (1, Cm)
                      out_ref):               # (Ci, TP)
    gate = gate_ref[...]
    into = into_ref[...]

    # Fused gate/into 1x1 convs (BN folded), one accumulator, one bias add.
    h = (jnp.dot(wg_ref[...], gate, preferred_element_type=jnp.float32)
         + jnp.dot(wi_ref[...], into, preferred_element_type=jnp.float32)
         + bgi_ref[...])                                  # (Cm, TP)

    psi = jnp.maximum(h, 0.0)                             # ReLU

    # psi-conv -> single channel per pixel, sigmoid.
    score = jnp.dot(wp_ref[...], psi,
                    preferred_element_type=jnp.float32) + bp_ref[0]   # (1, TP)
    score = jax.nn.sigmoid(score)

    # out = into * psi  (broadcast over the Ci sublanes)
    out_ref[...] = (into * score).astype(out_ref.dtype)


# ----------------------------- Wrapper --------------------------------------- #
def _fold_bn(w, b, gamma, beta, mean, var, eps=1e-5):
    """Fold eval-mode BatchNorm into a 1x1 conv.  w: (Cout, Cin), b: (Cout,)."""
    scale = gamma / jnp.sqrt(var + eps)
    w_f = w * scale[:, None]
    b_f = (b - mean) * scale + beta
    return w_f, b_f


def _pick_tile(Cg, Ci, HW, vmem_budget=24 << 20, max_tile=8192):
    """Pixels-per-block (lane axis).  Multiple of 256, bounded by a VMEM
    budget safe for v7x (64 MiB physical) as well as v5e/v6e."""
    bytes_per_pixel = 8 * (Cg + 2 * Ci)          # double-buffered f32 in/out blocks
    tp = min(max_tile, max(256, (vmem_budget // bytes_per_pixel) // 256 * 256))
    # If the whole spatial extent fits, use it (block dim == array dim is
    # always layout-legal).
    return HW if HW <= tp else tp


@jax.jit
def attention_block(gate, into, params):
    """gate, into: NCHW float32.  Returns NCHW float32 (same shape as `into`)."""
    N, Cg, H, W = gate.shape
    _, Ci, _, _ = into.shape
    Cm = params["wg"].shape[0]
    HW = H * W

    # Fold BN into the three 1x1 convs (plain-JAX glue).
    wg, bg = _fold_bn(params["wg"], params["bg"], params["g_gamma"], params["g_beta"],
                      params["g_mean"], params["g_var"])
    wi, bi = _fold_bn(params["wi"], params["bi"], params["i_gamma"], params["i_beta"],
                      params["i_mean"], params["i_var"])
    wp, bp = _fold_bn(params["wp"], params["bp"], params["p_gamma"], params["p_beta"],
                      params["p_mean"], params["p_var"])

    # Channels-first flat layout: pure reshapes, no transposes / extra HBM pass.
    gate_r = gate.reshape(N, Cg, HW)
    into_r = into.reshape(N, Ci, HW)

    # Conv weights are already (Cout, Cin) — exactly what W @ X needs.
    bgi = (bg + bi).reshape(Cm, 1)        # fused bias for the two 1x1 convs
    wp_r = wp.reshape(1, Cm)
    bp_r = bp.reshape(1).astype(jnp.float32)   # SMEM scalar via prefetch

    TP = _pick_tile(Cg, Ci, HW)
    grid = (N, pl.cdiv(HW, TP))           # N on the first axis keeps >=2 grid steps

    P = N * HW
    cost = pl.CostEstimate(
        flops=2 * P * Cm * (Cg + Ci) + 2 * P * Cm + 4 * P * Ci,
        transcendentals=P,
        bytes_accessed=4 * P * (Cg + 2 * Ci),
    )

    out_r = pl.pallas_call(
        _attention_kernel,
        out_shape=jax.ShapeDtypeStruct((N, Ci, HW), into.dtype),
        grid_spec=pltpu.PrefetchScalarGridSpec(
            num_scalar_prefetch=1,        # bp -> SMEM
            grid=grid,
            in_specs=[
                pl.BlockSpec((None, Cg, TP), lambda n, t, bp: (n, 0, t)),  # gate
                pl.BlockSpec((None, Ci, TP), lambda n, t, bp: (n, 0, t)),  # into
                pl.BlockSpec((Cm, Cg), lambda n, t, bp: (0, 0)),           # wg
                pl.BlockSpec((Cm, Ci), lambda n, t, bp: (0, 0)),           # wi
                pl.BlockSpec((Cm, 1), lambda n, t, bp: (0, 0)),            # bg+bi
                pl.BlockSpec((1, Cm), lambda n, t, bp: (0, 0)),            # wp
            ],
            out_specs=pl.BlockSpec((None, Ci, TP), lambda n, t, bp: (n, 0, t)),
        ),
        compiler_params=pltpu.CompilerParams(
            dimension_semantics=("parallel", "parallel"),
            vmem_limit_bytes=48 * 1024 * 1024,
        ),
        cost_estimate=cost,
    )(bp_r, gate_r, into_r, wg, wi, bgi, wp_r)

    # (N, Ci, HW) -> NCHW: pure reshape.
    return out_r.reshape(N, Ci, H, W)


# ----------------------------- Pure-JAX reference ---------------------------- #
def attention_block_ref(gate, into, params):
    wg, bg = _fold_bn(params["wg"], params["bg"], params["g_gamma"], params["g_beta"],
                      params["g_mean"], params["g_var"])
    wi, bi = _fold_bn(params["wi"], params["bi"], params["i_gamma"], params["i_beta"],
                      params["i_mean"], params["i_var"])
    wp, bp = _fold_bn(params["wp"], params["bp"], params["p_gamma"], params["p_beta"],
                      params["p_mean"], params["p_var"])
    g1 = jnp.einsum("nchw,mc->nmhw", gate, wg) + bg[None, :, None, None]
    x1 = jnp.einsum("nchw,mc->nmhw", into, wi) + bi[None, :, None, None]
    psi = jnp.maximum(g1 + x1, 0.0)
    s = jnp.einsum("nchw,mc->nmhw", psi, wp) + bp[None, :, None, None]
    s = jax.nn.sigmoid(s)
    return into * s


# ----------------------------- Main ------------------------------------------ #
def make_params(key, size_gate, size_into, size_middle):
    ks = jax.random.split(key, 6)
    f32 = jnp.float32
    return {
        # Conv2d 1x1 weights stored as (Cout, Cin)
        "wg": 0.2 * jax.random.normal(ks[0], (size_middle, size_gate), f32),
        "bg": 0.1 * jax.random.normal(ks[1], (size_middle,), f32),
        "wi": 0.2 * jax.random.normal(ks[2], (size_middle, size_into), f32),
        "bi": 0.1 * jax.random.normal(ks[3], (size_middle,), f32),
        "wp": 0.2 * jax.random.normal(ks[4], (1, size_middle), f32),
        "bp": 0.1 * jax.random.normal(ks[5], (1,), f32),
        # BatchNorm (eval-mode) parameters
        "g_gamma": jnp.linspace(0.8, 1.2, size_middle, dtype=f32),
        "g_beta": jnp.linspace(-0.1, 0.1, size_middle, dtype=f32),
        "g_mean": jnp.linspace(-0.05, 0.05, size_middle, dtype=f32),
        "g_var": jnp.linspace(0.9, 1.1, size_middle, dtype=f32),
        "i_gamma": jnp.linspace(1.1, 0.9, size_middle, dtype=f32),
        "i_beta": jnp.linspace(0.05, -0.05, size_middle, dtype=f32),
        "i_mean": jnp.linspace(0.02, -0.02, size_middle, dtype=f32),
        "i_var": jnp.linspace(1.05, 0.95, size_middle, dtype=f32),
        "p_gamma": jnp.array([1.05], f32),
        "p_beta": jnp.array([0.02], f32),
        "p_mean": jnp.array([0.01], f32),
        "p_var": jnp.array([0.98], f32),
    }


if __name__ == "__main__":
    key = jax.random.PRNGKey(0)
    k_gate, k_into, k_par = jax.random.split(key, 3)

    N, size_gate, size_into, size_middle, Hs, Ws = 2, 4, 4, 8, 16, 16
    gate = jax.random.normal(k_gate, (N, size_gate, Hs, Ws), jnp.float32)
    into = jax.random.normal(k_into, (N, size_into, Hs, Ws), jnp.float32)
    params = make_params(k_par, size_gate, size_into, size_middle)

    out = attention_block(gate, into, params)
    out = jax.block_until_ready(out)

    ref = jax.block_until_ready(attention_block_ref(gate, into, params))
    np.testing.assert_allclose(np.asarray(out), np.asarray(ref), rtol=1e-5, atol=1e-5)

    print("KERNEL_OK")
</pallas_src>

<mosaic_0001>
module attributes {stable_mosaic.version = 11 : i64} {
  func.func @_attention_kernel(%arg0: i32, %arg1: i32, %arg2: memref<1xf32, #tpu.memory_space<smem>>, %arg3: memref<1x4x256xf32, #tpu.memory_space<vmem>>, %arg4: memref<1x4x256xf32, #tpu.memory_space<vmem>>, %arg5: memref<8x4xf32, #tpu.memory_space<vmem>>, %arg6: memref<8x4xf32, #tpu.memory_space<vmem>>, %arg7: memref<8x1xf32, #tpu.memory_space<vmem>>, %arg8: memref<1x8xf32, #tpu.memory_space<vmem>>, %arg9: memref<1x4x256xf32, #tpu.memory_space<vmem>>) attributes {dimension_semantics = [#tpu.dimension_semantics<parallel>, #tpu.dimension_semantics<parallel>], iteration_bounds = array<i64: 2, 1>, scalar_prefetch = 1 : i64, scratch_operands = 0 : i64, tpu.core_type = #tpu.core_type<tc>, window_params = [{transform_indices = @transform_0, window_bounds = array<i64: 1, 4, 256>}, {transform_indices = @transform_1, window_bounds = array<i64: 1, 4, 256>}, {pipeline_mode = #tpu.pipeline_mode<synchronous>, transform_indices = @transform_2, window_bounds = array<i64: 8, 4>}, {pipeline_mode = #tpu.pipeline_mode<synchronous>, transform_indices = @transform_3, window_bounds = array<i64: 8, 4>}, {pipeline_mode = #tpu.pipeline_mode<synchronous>, transform_indices = @transform_4, window_bounds = array<i64: 8, 1>}, {pipeline_mode = #tpu.pipeline_mode<synchronous>, transform_indices = @transform_5, window_bounds = array<i64: 1, 8>}, {transform_indices = @transform_6, window_bounds = array<i64: 1, 4, 256>}]} {
    %c0 = arith.constant 0 : index
    %c0_0 = arith.constant 0 : index
    %c0_1 = arith.constant 0 : index
    %0 = vector.load %arg3[%c0, %c0_0, %c0_1] : memref<1x4x256xf32, #tpu.memory_space<vmem>>, vector<1x4x256xf32>
    %1 = vector.shape_cast %0 : vector<1x4x256xf32> to vector<4x256xf32>
    %c0_2 = arith.constant 0 : index
    %c0_3 = arith.constant 0 : index
    %c0_4 = arith.constant 0 : index
    %2 = vector.load %arg4[%c0_2, %c0_3, %c0_4] : memref<1x4x256xf32, #tpu.memory_space<vmem>>, vector<1x4x256xf32>
    %3 = vector.shape_cast %2 : vector<1x4x256xf32> to vector<4x256xf32>
    %c0_5 = arith.constant 0 : index
    %c0_6 = arith.constant 0 : index
    %4 = vector.load %arg5[%c0_5, %c0_6] : memref<8x4xf32, #tpu.memory_space<vmem>>, vector<8x4xf32>
    %cst = arith.constant dense<0.000000e+00> : vector<8x256xf32>
    %5 = tpu.matmul %4, %1, %cst {dimension_numbers = #tpu.dot_dimension_numbers<[1], [0], [0], [1], [0, 0, 1, 1], [], []>} : vector<8x4xf32>, vector<4x256xf32>, vector<8x256xf32> -> vector<8x256xf32>
    %c0_7 = arith.constant 0 : index
    %c0_8 = arith.constant 0 : index
    %6 = vector.load %arg6[%c0_7, %c0_8] : memref<8x4xf32, #tpu.memory_space<vmem>>, vector<8x4xf32>
    %cst_9 = arith.constant dense<0.000000e+00> : vector<8x256xf32>
    %7 = tpu.matmul %6, %3, %cst_9 {dimension_numbers = #tpu.dot_dimension_numbers<[1], [0], [0], [1], [0, 0, 1, 1], [], []>} : vector<8x4xf32>, vector<4x256xf32>, vector<8x256xf32> -> vector<8x256xf32>
    %8 = arith.addf %5, %7 : vector<8x256xf32>
    %c0_10 = arith.constant 0 : index
    %c0_11 = arith.constant 0 : index
    %9 = vector.load %arg7[%c0_10, %c0_11] : memref<8x1xf32, #tpu.memory_space<vmem>>, vector<8x1xf32>
    %10 = vector.broadcast %9 : vector<8x1xf32> to vector<8x256xf32>
    %11 = arith.addf %8, %10 : vector<8x256xf32>
    %cst_12 = arith.constant 0.000000e+00 : f32
    %12 = vector.broadcast %cst_12 : f32 to vector<8x256xf32>
    %13 = arith.maximumf %11, %12 : vector<8x256xf32>
    %c0_13 = arith.constant 0 : index
    %c0_14 = arith.constant 0 : index
    %14 = vector.load %arg8[%c0_13, %c0_14] : memref<1x8xf32, #tpu.memory_space<vmem>>, vector<1x8xf32>
    %cst_15 = arith.constant dense<0.000000e+00> : vector<1x256xf32>
    %15 = tpu.matmul %14, %13, %cst_15 {dimension_numbers = #tpu.dot_dimension_numbers<[1], [0], [0], [1], [0, 0, 1, 1], [], []>} : vector<1x8xf32>, vector<8x256xf32>, vector<1x256xf32> -> vector<1x256xf32>
    %c0_16 = arith.constant 0 : index
    %16 = memref.load %arg2[%c0_16] : memref<1xf32, #tpu.memory_space<smem>>
    %17 = vector.broadcast %16 : f32 to vector<1x256xf32>
    %18 = arith.addf %15, %17 : vector<1x256xf32>
    %19 = arith.negf %18 : vector<1x256xf32>
    %20 = math.exp %19 : vector<1x256xf32>
    %cst_17 = arith.constant 1.000000e+00 : f32
    %21 = vector.broadcast %cst_17 : f32 to vector<1x256xf32>
    %22 = arith.addf %21, %20 : vector<1x256xf32>
    %23 = arith.divf %21, %22 : vector<1x256xf32>
    %24 = vector.broadcast %23 : vector<1x256xf32> to vector<4x256xf32>
    %25 = arith.mulf %3, %24 : vector<4x256xf32>
    %c0_18 = arith.constant 0 : index
    %c0_19 = arith.constant 0 : index
    %c0_20 = arith.constant 0 : index
    %26 = vector.load %arg9[%c0_18, %c0_19, %c0_20] : memref<1x4x256xf32, #tpu.memory_space<vmem>>, vector<1x4x256xf32>
    %27 = vector.shape_cast %26 : vector<1x4x256xf32> to vector<4x256xf32>
    %28 = vector.shape_cast %25 : vector<4x256xf32> to vector<1x4x256xf32>
    tpu.vector_store %arg9[%c0_18, %c0_19, %c0_20], %28 {strides = array<i32>} : memref<1x4x256xf32, #tpu.memory_space<vmem>>, vector<1x4x256xf32>,
    return
  }
  func.func @transform_0(%arg0: i32, %arg1: i32, %arg2: memref<1xf32, #tpu.memory_space<smem>>) -> (i32, i32, i32) {
    %c0_i32 = arith.constant 0 : i32
    %c0_i32_0 = arith.constant 0 : i32
    return %arg0, %c0_i32, %arg1 : i32, i32, i32
  }
  func.func @transform_1(%arg0: i32, %arg1: i32, %arg2: memref<1xf32, #tpu.memory_space<smem>>) -> (i32, i32, i32) {
    %c0_i32 = arith.constant 0 : i32
    %c0_i32_0 = arith.constant 0 : i32
    return %arg0, %c0_i32, %arg1 : i32, i32, i32
  }
  func.func @transform_2(%arg0: i32, %arg1: i32, %arg2: memref<1xf32, #tpu.memory_space<smem>>) -> (i32, i32) {
    %c0_i32 = arith.constant 0 : i32
    %c0_i32_0 = arith.constant 0 : i32
    %c0_i32_1 = arith.constant 0 : i32
    return %c0_i32, %c0_i32_0 : i32, i32
  }
  func.func @transform_3(%arg0: i32, %arg1: i32, %arg2: memref<1xf32, #tpu.memory_space<smem>>) -> (i32, i32) {
    %c0_i32 = arith.constant 0 : i32
    %c0_i32_0 = arith.constant 0 : i32
    %c0_i32_1 = arith.constant 0 : i32
    return %c0_i32, %c0_i32_0 : i32, i32
  }
  func.func @transform_4(%arg0: i32, %arg1: i32, %arg2: memref<1xf32, #tpu.memory_space<smem>>) -> (i32, i32) {
    %c0_i32 = arith.constant 0 : i32
    %c0_i32_0 = arith.constant 0 : i32
    %c0_i32_1 = arith.constant 0 : i32
    return %c0_i32, %c0_i32_0 : i32, i32
  }
  func.func @transform_5(%arg0: i32, %arg1: i32, %arg2: memref<1xf32, #tpu.memory_space<smem>>) -> (i32, i32) {
    %c0_i32 = arith.constant 0 : i32
    %c0_i32_0 = arith.constant 0 : i32
    %c0_i32_1 = arith.constant 0 : i32
    return %c0_i32, %c0_i32_0 : i32, i32
  }
  func.func @transform_6(%arg0: i32, %arg1: i32, %arg2: memref<1xf32, #tpu.memory_space<smem>>) -> (i32, i32, i32) {
    %c0_i32 = arith.constant 0 : i32
    %c0_i32_0 = arith.constant 0 : i32
    return %arg0, %c0_i32, %arg1 : i32, i32, i32
  }
}

</mosaic_0001>

<llo_original>
// kernel: attention_block.1
$region0: #{attention_block.1}
  #allocation0 [shape = 'u32[]', space=smem, size = 0x4, offset = 0x4, fixed_abs, tag = 'smem constant byte address 0x4 - core index']
  #allocation1 [shape = 'u32[72,128]{1,0:T(1,128)}', space=vmem, size = 0x9000, scoped, tag = 'internal scratch']
  #allocation2 [shape = 's32[1]{0}', space=sflag, size = 0x4, scoped, tag = 'scoped memory for attention_block.1']
  #allocation3 [shape = 'f32[1]{0:T(128)S(6)}', space=smem, size = 0x200, scoped, tag = 'prefetched SMEM operand 0']
  %s0 = inlined_call_operand.<no memory space> [shape: f32[1], index: 0, kind: input, shape index: {}]
  %s1 = inlined_call_operand.vmem [shape: f32[2,4,256], index: 1, kind: input, shape index: {}]
  %s2 = inlined_call_operand.vmem [shape: f32[2,4,256], index: 2, kind: input, shape index: {}]
  %s3 = inlined_call_operand.vmem [shape: f32[8,4], index: 3, kind: input, shape index: {}]
  %s4 = inlined_call_operand.vmem [shape: f32[8,4], index: 4, kind: input, shape index: {}]
  %s5 = inlined_call_operand.vmem [shape: f32[8,1], index: 5, kind: input, shape index: {}]
  %s6 = inlined_call_operand.vmem [shape: f32[1,8], index: 6, kind: input, shape index: {}]
  %s7 = inlined_call_operand.vmem [shape: f32[2,4,256], index: 7, kind: output, shape index: {}]
  %s8 = sld [smem:[#allocation0]]
  $region57: #{attention_block.1} parent=0
    _
  %s10 = ssub.s32 1, %s8
  %s11 = scalar_select 0, %s10, %s8
  %12 = sst [smem:[#allocation3]] %s0
  loop: start=0, step=1, limit=4
  $region2: #{attention_block.1} parent=0 // loop_pre_header
    _
  $region3: #{attention_block.1} parent=0 // loop_header
    %s14 = sphi 0, %s18
    %p15 = scmp.ge.s32.totalorder %s14, 4
    %s21 = sphi 0, %s33
    %s22 = sphi 0, %s29
    %s23 = sphi 0, %s21
    %s24 = sphi 0, %s22
    %s25 = sphi 0, %s23
    %s26 = sphi 0, %s24
    %s38 = sphi 0, %s40
    %s41 = sphi 0, %s38
    %s42 = sphi 0, %s41
    %s58 = sphi 0, %s42
    %s66 = sphi 0, %s68
    %s69 = sphi 0, %s66
    %s70 = sphi 0, %s69
    %s86 = sphi 0, %s70
    %s90 = sphi 0, %s90
    %s92 = sphi 0, %s90
    %s93 = sphi 0, %s92
    %s107 = sphi 0, %s93
    %s111 = sphi 0, %s111
    %s113 = sphi 0, %s111
    %s114 = sphi 0, %s113
    %s128 = sphi 0, %s114
    %s132 = sphi 0, %s132
    %s134 = sphi 0, %s132
    %s135 = sphi 0, %s134
    %s149 = sphi 0, %s135
    %s153 = sphi 0, %s153
    %s155 = sphi 0, %s153
    %s156 = sphi 0, %s155
    %s170 = sphi 0, %s156
    %s178 = sphi 0, %s180
    %s181 = sphi 0, %s178
    %s182 = sphi 0, %s181
    %s198 = sphi 0, %s182
  $region4: #{attention_block.1} parent=0 // loop_header_branch
    %17 = sbr.rel (%p15) target = $region8
  $region5: #{attention_block.1} parent=0 // loop_body
    %s19 = ssub.s32 %s14, 1
    %s20 = ssub.s32 %s14, 2
    %s27 = sadd.s32 1, %s22
    %p28 = scmp.ge.s32.totalorder %s27, 1
    %s29 = scalar_select %p28, 0, %s27
    %s30 = sadd.s32 1, %s21
    %s31 = scalar_select %p28, %s30, %s21
    %p32 = scmp.ge.s32.totalorder %s31, 2
    %s33 = scalar_select %p32, 0, %s31
    %s34 = ssub.s32 %s21, %s33
    %s35 = ssub.s32 %s22, %s29
    %s36 = sor.u32 %s34, %s35
    %p37 = scmp.eq.s32.totalorder %s36, 0
    %s39 = sadd.s32 %s38, 1
    %s40 = scalar_select %p37, %s38, %s39
    %p43 = pneg %p37
    %p44 = scmp.eq.s32.totalorder %s14, 1
    %p45 = por %p43, %p44
    %p46 = scmp.ne.s32.totalorder %s38, %s41
    %p47 = scmp.eq.s32.totalorder %s14, 0
    %p48 = por %p46, %p47
    %p49 = scmp.ne.s32.totalorder %s38, %s41
    %p50 = scmp.eq.s32.totalorder %s19, 1
    %p51 = por %p49, %p50
    %p52 = scmp.ne.s32.totalorder %s41, %s42
    %p53 = scmp.eq.s32.totalorder %s19, 0
    %p54 = por %p52, %p53
    %p55 = scmp.ne.s32.totalorder %s41, %s42
    %p56 = scmp.eq.s32.totalorder %s20, 1
    %p57 = por %p55, %p56
    %p59 = scmp.ne.s32.totalorder %s42, %s58
    %p60 = scmp.eq.s32.totalorder %s20, 0
    %p61 = por %p59, %p60
    %s62 = ssub.s32 %s21, %s33
    %s63 = ssub.s32 %s22, %s29
    %s64 = sor.u32 %s62, %s63
    %p65 = scmp.eq.s32.totalorder %s64, 0
    %s67 = sadd.s32 %s66, 1
    %s68 = scalar_select %p65, %s66, %s67
    %p71 = pneg %p65
    %p72 = scmp.eq.s32.totalorder %s14, 1
    %p73 = por %p71, %p72
    %p74 = scmp.ne.s32.totalorder %s66, %s69
    %p75 = scmp.eq.s32.totalorder %s14, 0
    %p76 = por %p74, %p75
    %p77 = scmp.ne.s32.totalorder %s66, %s69
    %p78 = scmp.eq.s32.totalorder %s19, 1
    %p79 = por %p77, %p78
    %p80 = scmp.ne.s32.totalorder %s69, %s70
    %p81 = scmp.eq.s32.totalorder %s19, 0
    %p82 = por %p80, %p81
    %p83 = scmp.ne.s32.totalorder %s69, %s70
    %p84 = scmp.eq.s32.totalorder %s20, 1
    %p85 = por %p83, %p84
    %p87 = scmp.ne.s32.totalorder %s70, %s86
    %p88 = scmp.eq.s32.totalorder %s20, 0
    %p89 = por %p87, %p88
    %s91 = sadd.s32 %s90, 1
    %p94 = scmp.eq.s32.totalorder %s14, 1
    %p95 = scmp.ne.s32.totalorder %s90, %s92
    %p96 = scmp.eq.s32.totalorder %s14, 0
    %p97 = por %p95, %p96
    %p98 = scmp.ne.s32.totalorder %s90, %s92
    %p99 = scmp.eq.s32.totalorder %s19, 1
    %p100 = por %p98, %p99
    %p101 = scmp.ne.s32.totalorder %s92, %s93
    %p102 = scmp.eq.s32.totalorder %s19, 0
    %p103 = por %p101, %p102
    %p104 = scmp.ne.s32.totalorder %s92, %s93
    %p105 = scmp.eq.s32.totalorder %s20, 1
    %p106 = por %p104, %p105
    %p108 = scmp.ne.s32.totalorder %s93, %s107
    %p109 = scmp.eq.s32.totalorder %s20, 0
    %p110 = por %p108, %p109
    %s112 = sadd.s32 %s111, 1
    %p115 = scmp.eq.s32.totalorder %s14, 1
    %p116 = scmp.ne.s32.totalorder %s111, %s113
    %p117 = scmp.eq.s32.totalorder %s14, 0
    %p118 = por %p116, %p117
    %p119 = scmp.ne.s32.totalorder %s111, %s113
    %p120 = scmp.eq.s32.totalorder %s19, 1
    %p121 = por %p119, %p120
    %p122 = scmp.ne.s32.totalorder %s113, %s114
    %p123 = scmp.eq.s32.totalorder %s19, 0
    %p124 = por %p122, %p123
    %p125 = scmp.ne.s32.totalorder %s113, %s114
    %p126 = scmp.eq.s32.totalorder %s20, 1
    %p127 = por %p125, %p126
    %p129 = scmp.ne.s32.totalorder %s114, %s128
    %p130 = scmp.eq.s32.totalorder %s20, 0
    %p131 = por %p129, %p130
    %s133 = sadd.s32 %s132, 1
    %p136 = scmp.eq.s32.totalorder %s14, 1
    %p137 = scmp.ne.s32.totalorder %s132, %s134
    %p138 = scmp.eq.s32.totalorder %s14, 0
    %p139 = por %p137, %p138
    %p140 = scmp.ne.s32.totalorder %s132, %s134
    %p141 = scmp.eq.s32.totalorder %s19, 1
    %p142 = por %p140, %p141
    %p143 = scmp.ne.s32.totalorder %s134, %s135
    %p144 = scmp.eq.s32.totalorder %s19, 0
    %p145 = por %p143, %p144
    %p146 = scmp.ne.s32.totalorder %s134, %s135
    %p147 = scmp.eq.s32.totalorder %s20, 1
    %p148 = por %p146, %p147
    %p150 = scmp.ne.s32.totalorder %s135, %s149
    %p151 = scmp.eq.s32.totalorder %s20, 0
    %p152 = por %p150, %p151
    %s154 = sadd.s32 %s153, 1
    %p157 = scmp.eq.s32.totalorder %s14, 1
    %p158 = scmp.ne.s32.totalorder %s153, %s155
    %p159 = scmp.eq.s32.totalorder %s14, 0
    %p160 = por %p158, %p159
    %p161 = scmp.ne.s32.totalorder %s153, %s155
    %p162 = scmp.eq.s32.totalorder %s19, 1
    %p163 = por %p161, %p162
    %p164 = scmp.ne.s32.totalorder %s155, %s156
    %p165 = scmp.eq.s32.totalorder %s19, 0
    %p166 = por %p164, %p165
    %p167 = scmp.ne.s32.totalorder %s155, %s156
    %p168 = scmp.eq.s32.totalorder %s20, 1
    %p169 = por %p167, %p168
    %p171 = scmp.ne.s32.totalorder %s156, %s170
    %p172 = scmp.eq.s32.totalorder %s20, 0
    %p173 = por %p171, %p172
    %s174 = ssub.s32 %s21, %s33
    %s175 = ssub.s32 %s22, %s29
    %s176 = sor.u32 %s174, %s175
    %p177 = scmp.eq.s32.totalorder %s176, 0
    %s179 = sadd.s32 %s178, 1
    %s180 = scalar_select %p177, %s178, %s179
    %p183 = pneg %p177
    %p184 = scmp.eq.s32.totalorder %s14, 1
    %p185 = por %p183, %p184
    %p186 = scmp.ne.s32.totalorder %s178, %s181
    %p187 = scmp.eq.s32.totalorder %s14, 0
    %p188 = por %p186, %p187
    %p189 = scmp.ne.s32.totalorder %s178, %s181
    %p190 = scmp.eq.s32.totalorder %s19, 1
    %p191 = por %p189, %p190
    %p192 = scmp.ne.s32.totalorder %s181, %s182
    %p193 = scmp.eq.s32.totalorder %s19, 0
    %p194 = por %p192, %p193
    %p195 = scmp.ne.s32.totalorder %s181, %s182
    %p196 = scmp.eq.s32.totalorder %s20, 1
    %p197 = por %p195, %p196
    %p199 = scmp.ne.s32.totalorder %s182, %s198
    %p200 = scmp.eq.s32.totalorder %s20, 0
    %p201 = por %p199, %p200
    %p202 = scmp.le.s32.totalorder 1, %s14
    %p203 = scmp.lt.s32.totalorder %s14, 3
    %p204 = pnand %p202, %p203
    %p205 = pneg %p204
    // Predicated region
    $region9: #{attention_block.1} parent=5 // pred_check
      _
    $region10: #{attention_block.1} parent=5 // pred_check_branch
      %207 = sbr.rel (%p204) target = $region12
    $region11: #{attention_block.1} parent=5 // pred_region
      %s208 = ssub.s32 %s14, 1
      // Predicated region
      $region13: #{attention_block.1} parent=11 // pred_check
        %p209 = pneg %p103
      $region14: #{attention_block.1} parent=11 // pred_check_branch
        %211 = sbr.rel (%p209) target = $region16
      $region15: #{attention_block.1} parent=11 // pred_region
        _
      $region16: #{attention_block.1} parent=11 // pred_fallthru
        _
      // Predicated region
      $region17: #{attention_block.1} parent=11 // pred_check
        %p212 = pneg %p124
      $region18: #{attention_block.1} parent=11 // pred_check_branch
        %214 = sbr.rel (%p212) target = $region20
      $region19: #{attention_block.1} parent=11 // pred_region
        _
      $region20: #{attention_block.1} parent=11 // pred_fallthru
        _
      // Predicated region
      $region21: #{attention_block.1} parent=11 // pred_check
        %p215 = pneg %p145
      $region22: #{attention_block.1} parent=11 // pred_check_branch
        %217 = sbr.rel (%p215) target = $region24
      $region23: #{attention_block.1} parent=11 // pred_region
        _
      $region24: #{attention_block.1} parent=11 // pred_fallthru
        _
      // Predicated region
      $region25: #{attention_block.1} parent=11 // pred_check
        %p218 = pneg %p166
      $region26: #{attention_block.1} parent=11 // pred_check_branch
        %220 = sbr.rel (%p218) target = $region28
      $region27: #{attention_block.1} parent=11 // pred_region
        _
      $region28: #{attention_block.1} parent=11 // pred_fallthru
        _
    $region12: #{attention_block.1} parent=5 // pred_fallthru
      _
    %p221 = scmp.lt.s32.totalorder %s14, 2
    // Predicated region
    $region29: #{attention_block.1} parent=5 // pred_check
      %p222 = pneg %p221
    $region30: #{attention_block.1} parent=5 // pred_check_branch
      %224 = sbr.rel (%p222) target = $region32
    $region31: #{attention_block.1} parent=5 // pred_region
      // Predicated region
      $region33: #{attention_block.1} parent=31 // pred_check
        %p225 = pneg %p48
      $region34: #{attention_block.1} parent=31 // pred_check_branch
        %227 = sbr.rel (%p225) target = $region36
      $region35: #{attention_block.1} parent=31 // pred_region
        %s228 = smul.u32 2, %s22
        %p229 = scmp.lt.s32.totalorder %s21, 1
        %s230 = scalar_select %p229, %s21, 1
        %p231 = scmp.lt.s32.totalorder %s228, 1
        %s232 = scalar_select %p231, %s228, 1
        %s233 = smul.addr %s230, 2
        %s234 = sadd.s32 %s232, %s233
        %s235 = smul.addr %s234, 4
        %s236 = scalar_lea.vmem %s1, %s235
        %s237 = smul.u32 2, %s22
      $region36: #{attention_block.1} parent=31 // pred_fallthru
        _
      // Predicated region
      $region37: #{attention_block.1} parent=31 // pred_check
        %p238 = pneg %p76
      $region38: #{attention_block.1} parent=31 // pred_check_branch
        %240 = sbr.rel (%p238) target = $region40
      $region39: #{attention_block.1} parent=31 // pred_region
        %s241 = smul.u32 2, %s22
        %p242 = scmp.lt.s32.totalorder %s21, 1
        %s243 = scalar_select %p242, %s21, 1
        %p244 = scmp.lt.s32.totalorder %s241, 1
        %s245 = scalar_select %p244, %s241, 1
        %s246 = smul.addr %s243, 2
        %s247 = sadd.s32 %s245, %s246
        %s248 = smul.addr %s247, 4
        %s249 = scalar_lea.vmem %s2, %s248
        %s250 = smul.u32 2, %s22
      $region40: #{attention_block.1} parent=31 // pred_fallthru
        _
    $region32: #{attention_block.1} parent=5 // pred_fallthru
      _
    %p251 = scmp.le.s32.totalorder 1, %s14
    %p252 = scmp.lt.s32.totalorder %s14, 3
    %p253 = pnand %p251, %p252
    %p254 = pneg %p253
    // Predicated region
    $region41: #{attention_block.1} parent=5 // pred_check
      _
    $region42: #{attention_block.1} parent=5 // pred_check_branch
      %256 = sbr.rel (%p253) target = $region44
    $region43: #{attention_block.1} parent=5 // pred_region
      %s257 = ssub.s32 %s14, 1
      %s258 = smul.u32 2, %s24
      %p259 = scmp.lt.s32.totalorder %s23, 1
      %s260 = scalar_select %p259, %s23, 1
      %p261 = scmp.lt.s32.totalorder %s258, 1
      %s262 = scalar_select %p261, %s258, 1
      %s263 = smul.addr %s260, 2
      %s264 = sadd.s32 %s262, %s263
      %s265 = smul.addr %s264, 4
      %s266 = scalar_lea.vmem %s1, %s265
      %p267 = pneg %p54
      %p268 = pneg %p51
      %s269 = smul.u32 2, %s24
      %p270 = scmp.lt.s32.totalorder %s23, 1
      %s271 = scalar_select %p270, %s23, 1
      %p272 = scmp.lt.s32.totalorder %s269, 1
      %s273 = scalar_select %p272, %s269, 1
      %s274 = smul.addr %s271, 2
      %s275 = sadd.s32 %s273, %s274
      %s276 = smul.addr %s275, 4
      %s277 = scalar_lea.vmem %s2, %s276
      %p278 = pneg %p82
      %p279 = pneg %p79
      %p280 = pneg %p103
      %p281 = pneg %p100
      %p282 = pneg %p124
      %p283 = pneg %p121
      %p284 = pneg %p145
      %p285 = pneg %p142
      %p286 = pneg %p166
      %p287 = pneg %p163
      %p288 = pneg %p194
      %p289 = pneg %p191
      %s290 = smul.u32 2, %s24
      %p291 = scmp.lt.s32.totalorder %s23, 1
      %s292 = scalar_select %p291, %s23, 1
      %p293 = scmp.lt.s32.totalorder %s290, 1
      %s294 = scalar_select %p293, %s290, 1
      %s295 = smul.addr %s292, 2
      %s296 = sadd.s32 %s294, %s295
      %s297 = smul.addr %s296, 4
      %s298 = scalar_lea.vmem %s7, %s297
      %s299 = smul.u32 2, %s24
      %p300 = scmp.lt.s32.totalorder %s23, 1
      %s301 = scalar_select %p300, %s23, 1
      %p302 = scmp.lt.s32.totalorder %s299, 1
      %s303 = scalar_select %p302, %s299, 1
      %s304 = smul.addr %s301, 2
      %s305 = sadd.s32 %s303, %s304
      %s306 = smul.addr %s305, 4
      %s307 = scalar_lea.vmem %s1, %s306
      %s308 = smul.u32 2, %s24
      %s309 = smul.u32 2, %s24
      %p310 = scmp.lt.s32.totalorder %s23, 1
      %s311 = scalar_select %p310, %s23, 1
      %p312 = scmp.lt.s32.totalorder %s309, 1
      %s313 = scalar_select %p312, %s309, 1
      %s314 = smul.addr %s311, 2
      %s315 = sadd.s32 %s313, %s314
      %s316 = smul.addr %s315, 4
      %s317 = scalar_lea.vmem %s2, %s316
      %s318 = smul.u32 2, %s24
      %s319 = smul.u32 2, %s24
      %p320 = scmp.lt.s32.totalorder %s23, 1
      %s321 = scalar_select %p320, %s23, 1
      %p322 = scmp.lt.s32.totalorder %s319, 1
      %s323 = scalar_select %p322, %s319, 1
      %s324 = smul.addr %s321, 2
      %s325 = sadd.s32 %s323, %s324
      %s326 = smul.addr %s325, 4
      %s327 = scalar_lea.vmem %s7, %s326
      %s328 = smul.u32 2, %s24
      %v329 = vld [vmem:[%s307] sm:$0xff]
      %v330 = vld [vmem:[%s317] sm:$0xff]
      %v331 = vld [vmem:[%s3] sm:$0xff]
      %v332 = vld [vmem:[%s4] sm:$0xff]
      %334 = vst [vmem:[#allocation1] ss:$2 sm:$0xff] %v330
      %v335 = vld.sshfl [vmem:[#allocation1] sm:$0xff pattern:$0x75316420]
      %v336 = vld.sshfl [vmem:[#allocation1 + $0x8] sm:$0xff pattern:$0x75316420]
      %vm337 = vcmask 31744
      %v339 = vsel %vm337, %v332, 0
      %vm341 = vcmask 1043456
      %v342 = vsel %vm341, %v335, 0
      %v344 = vsel %vm341, %v336, 0
      %346 = vmatpush.msra.mxu0 0.0
      %347 = vmatpush.msra.mxu0 0.0
      %348 = vmatpush.msra.mxu0 0.0
      %349 = vmatpush.msra.mxu0 0.0
      %350 = vmatpush.msra.mxu0 0.0
      %351 = vmatpush.msra.mxu0 0.0
      %352 = vmatpush.msra.mxu0 0.0
      %353 = vmatpush.msra.mxu0 0.0
      %354 = vmatpush.msra.mxu0 0.0
      %355 = vmatpush.msra.mxu0 0.0
      %356 = vmatpush.msra.mxu0 0.0
      %357 = vmatpush.msra.mxu0 0.0
      %358 = vmatpush.msra.mxu0 0.0
      %359 = vmatpush.msra.mxu0 0.0
      %360 = vmatpush.msra.mxu0 0.0
      %361 = vmatpush.msra.mxu0 %v342
      %362 = vmatmul.f32.gmra.mxu0 %v339
      %v363 = vpop.f32.mrf.mxu0
      %v364 = vadd.f32 0.0, %v363
      %365 = vdwg.mxu0
      %366 = vmatpush.msra.mxu0 0.0
      %367 = vmatpush.msra.mxu0 0.0
      %368 = vmatpush.msra.mxu0 0.0
      %369 = vmatpush.msra.mxu0 0.0
      %370 = vmatpush.msra.mxu0 0.0
      %371 = vmatpush.msra.mxu0 0.0
      %372 = vmatpush.msra.mxu0 0.0
      %373 = vmatpush.msra.mxu0 0.0
      %374 = vmatpush.msra.mxu0 0.0
      %375 = vmatpush.msra.mxu0 0.0
      %376 = vmatpush.msra.mxu0 0.0
      %377 = vmatpush.msra.mxu0 0.0
      %378 = vmatpush.msra.mxu0 0.0
      %379 = vmatpush.msra.mxu0 0.0
      %380 = vmatpush.msra.mxu0 0.0
      %381 = vmatpush.msra.mxu0 %v344
      %382 = vmatmul.f32.gmra.mxu0 %v339
      %v383 = vpop.f32.mrf.mxu0
      %v384 = vadd.f32 0.0, %v383
      %385 = vdwg.mxu0
      %387 = vst [vmem:[#allocation1] ss:$2 sm:$0xff] %v329
      %v388 = vld.sshfl [vmem:[#allocation1] sm:$0xff pattern:$0x75316420]
      %v389 = vld.sshfl [vmem:[#allocation1 + $0x8] sm:$0xff pattern:$0x75316420]
      %v391 = vsel %vm337, %v331, 0
      %v393 = vsel %vm341, %v388, 0
      %v395 = vsel %vm341, %v389, 0
      %397 = vmatpush.msra.mxu0 0.0
      %398 = vmatpush.msra.mxu0 0.0
      %399 = vmatpush.msra.mxu0 0.0
      %400 = vmatpush.msra.mxu0 0.0
      %401 = vmatpush.msra.mxu0 0.0
      %402 = vmatpush.msra.mxu0 0.0
      %403 = vmatpush.msra.mxu0 0.0
      %404 = vmatpush.msra.mxu0 0.0
      %405 = vmatpush.msra.mxu0 0.0
      %406 = vmatpush.msra.mxu0 0.0
      %407 = vmatpush.msra.mxu0 0.0
      %408 = vmatpush.msra.mxu0 0.0
      %409 = vmatpush.msra.mxu0 0.0
      %410 = vmatpush.msra.mxu0 0.0
      %411 = vmatpush.msra.mxu0 0.0
      %412 = vmatpush.msra.mxu0 %v393
      %413 = vmatmul.f32.gmra.mxu0 %v391
      %v414 = vpop.f32.mrf.mxu0
      %v415 = vadd.f32 %v364, %v414
      %416 = vdwg.mxu0
      %417 = vmatpush.msra.mxu0 0.0
      %418 = vmatpush.msra.mxu0 0.0
      %419 = vmatpush.msra.mxu0 0.0
      %420 = vmatpush.msra.mxu0 0.0
      %421 = vmatpush.msra.mxu0 0.0
      %422 = vmatpush.msra.mxu0 0.0
      %423 = vmatpush.msra.mxu0 0.0
      %424 = vmatpush.msra.mxu0 0.0
      %425 = vmatpush.msra.mxu0 0.0
      %426 = vmatpush.msra.mxu0 0.0
      %427 = vmatpush.msra.mxu0 0.0
      %428 = vmatpush.msra.mxu0 0.0
      %429 = vmatpush.msra.mxu0 0.0
      %430 = vmatpush.msra.mxu0 0.0
      %431 = vmatpush.msra.mxu0 0.0
      %432 = vmatpush.msra.mxu0 %v395
      %433 = vmatmul.f32.gmra.mxu0 %v391
      %v434 = vpop.f32.mrf.mxu0
      %v435 = vadd.f32 %v384, %v434
      %436 = vdwg.mxu0
      %v437 = vld [vmem:[%s5] sm:$0xff]
      %439 = vset.pattern.permute.xlu0 0
      %440 = vperm.xlu0 %439, %v437
      %v441 = vpop.permute.xlu0 %440
      %v443 = vadd.f32 %v415, %v441
      %v444 = vadd.f32 %v435, %v441
      %v445 = vmax.f32 %v443, 0.0
      %v446 = vmax.f32 %v444, 0.0
      %v447 = vld [vmem:[%s6] sm:$0x1]
      %s448 = sld [smem:[#allocation3]]
      %v449 = vstv %s448
      %vm450 = vcmask 64512
      %v452 = vsel %vm450, %v447, 0
      %454 = vmatpush.msra.mxu0 0.0
      %455 = vmatpush.msra.mxu0 0.0
      %456 = vmatpush.msra.mxu0 0.0
      %457 = vmatpush.msra.mxu0 0.0
      %458 = vmatpush.msra.mxu0 0.0
      %459 = vmatpush.msra.mxu0 0.0
      %460 = vmatpush.msra.mxu0 0.0
      %461 = vmatpush.msra.mxu0 0.0
      %462 = vmatpush.msra.mxu0 0.0
      %463 = vmatpush.msra.mxu0 0.0
      %464 = vmatpush.msra.mxu0 0.0
      %465 = vmatpush.msra.mxu0 0.0
      %466 = vmatpush.msra.mxu0 0.0
      %467 = vmatpush.msra.mxu0 0.0
      %468 = vmatpush.msra.mxu0 0.0
      %469 = vmatpush.msra.mxu0 %v445
      %470 = vmatmul.f32.gmra.mxu0 %v452
      %v471 = vpop.f32.mrf.mxu0
      %v472 = vadd.f32 %v449, %v471
      %473 = vdwg.mxu0
      %474 = vmatpush.msra.mxu0 0.0
      %475 = vmatpush.msra.mxu0 0.0
      %476 = vmatpush.msra.mxu0 0.0
      %477 = vmatpush.msra.mxu0 0.0
      %478 = vmatpush.msra.mxu0 0.0
      %479 = vmatpush.msra.mxu0 0.0
      %480 = vmatpush.msra.mxu0 0.0
      %481 = vmatpush.msra.mxu0 0.0
      %482 = vmatpush.msra.mxu0 0.0
      %483 = vmatpush.msra.mxu0 0.0
      %484 = vmatpush.msra.mxu0 0.0
      %485 = vmatpush.msra.mxu0 0.0
      %486 = vmatpush.msra.mxu0 0.0
      %487 = vmatpush.msra.mxu0 0.0
      %488 = vmatpush.msra.mxu0 0.0
      %489 = vmatpush.msra.mxu0 %v446
      %490 = vmatmul.f32.gmra.mxu0 %v452
      %v491 = vpop.f32.mrf.mxu0
      %v492 = vadd.f32 %v449, %v491
      %493 = vdwg.mxu0
      %v494 = vxor.u32 %v472, 2147483648
      %v495 = vxor.u32 %v492, 2147483648
      %v496 = vmul.f32 %v494, 1.442695
      %v497 = vpow.pop %v496
      %v498 = vmul.f32 %v495, 1.442695
      %v499 = vpow.pop %v498
      %v500 = vadd.f32 %v497, 1.0
      %v501 = vadd.f32 %v499, 1.0
      %v502 = vrcp.pop %v500
      %v503 = vmul.f32 %v500, %v502
      %v504 = vsub.f32 1.0, %v503
      %v505 = vmul.f32 %v502, %v504
      %v506 = vadd.f32 %v502, %v505
      %vm507 = vweird.f32 %v500
      %vm508 = vweird.f32 %v502
      %vm509 = vmor %vm507, %vm508
      %v510 = vsel %vm509, %v502, %v506
      %v511 = vand.u32 2147483647, %v500
      %vm512 = vcmp.eq.f32.partialorder %v511, 8.507059e+37
      %v513 = vand.u32 %v500, 2147483648
      %v514 = vor.u32 1.1754944e-38, %v513
      %v515 = vsel %vm512, %v514, %v510
      %v516 = vmul.f32 1.0, %v515
      %v517 = vrcp.pop %v501
      %v518 = vmul.f32 %v501, %v517
      %v519 = vsub.f32 1.0, %v518
      %v520 = vmul.f32 %v517, %v519
      %v521 = vadd.f32 %v517, %v520
      %vm522 = vweird.f32 %v501
      %vm523 = vweird.f32 %v517
      %vm524 = vmor %vm522, %vm523
      %v525 = vsel %vm524, %v517, %v521
      %v526 = vand.u32 2147483647, %v501
      %vm527 = vcmp.eq.f32.partialorder %v526, 8.507059e+37
      %v528 = vand.u32 %v501, 2147483648
      %v529 = vor.u32 1.1754944e-38, %v528
      %v530 = vsel %vm527, %v529, %v525
      %v531 = vmul.f32 1.0, %v530
      %v532 = vperm.slane %v516, 0
      %v533 = vperm.slane %v531, 0
      %v536 = vrot.slane %v533, 4
      %v537 = vsel %vm341, %v532, %v536
      %v539 = vmul.f32 %v330, %v537
      %540 = vst [vmem:[%s327] sm:$0xff] %v539
      %s541 = smul.u32 2, %s24
      %p542 = scmp.lt.s32.totalorder %s23, 1
      %s543 = scalar_select %p542, %s23, 1
      %p544 = scmp.lt.s32.totalorder %s541, 1
      %s545 = scalar_select %p544, %s541, 1
      %s546 = smul.addr %s543, 2
      %s547 = sadd.s32 %s545, %s546
      %s548 = smul.addr %s547, 4
      %s549 = scalar_lea.vmem %s7, %s548
      // Predicated region
      $region45: #{attention_block.1} parent=43 // pred_check
        %p550 = pneg %p191
      $region46: #{attention_block.1} parent=43 // pred_check_branch
        %552 = sbr.rel (%p550) target = $region48
      $region47: #{attention_block.1} parent=43 // pred_region
        %s553 = smul.u32 2, %s24
      $region48: #{attention_block.1} parent=43 // pred_fallthru
        _
    $region44: #{attention_block.1} parent=5 // pred_fallthru
      _
    %p554 = scmp.le.s32.totalorder 2, %s14
    // Predicated region
    $region49: #{attention_block.1} parent=5 // pred_check
      %p555 = pneg %p554
    $region50: #{attention_block.1} parent=5 // pred_check_branch
      %557 = sbr.rel (%p555) target = $region52
    $region51: #{attention_block.1} parent=5 // pred_region
      %s558 = ssub.s32 %s14, 2
      // Predicated region
      $region53: #{attention_block.1} parent=51 // pred_check
        %p559 = pneg %p197
      $region54: #{attention_block.1} parent=51 // pred_check_branch
        %561 = sbr.rel (%p559) target = $region56
      $region55: #{attention_block.1} parent=51 // pred_region
        %s562 = smul.u32 2, %s26
        %p563 = scmp.lt.s32.totalorder %s25, 1
        %s564 = scalar_select %p563, %s25, 1
        %p565 = scmp.lt.s32.totalorder %s562, 1
        %s566 = scalar_select %p565, %s562, 1
        %s567 = smul.addr %s564, 2
        %s568 = sadd.s32 %s566, %s567
        %s569 = smul.addr %s568, 4
        %s570 = scalar_lea.vmem %s7, %s569
      $region56: #{attention_block.1} parent=51 // pred_fallthru
        _
    $region52: #{attention_block.1} parent=5 // pred_fallthru
      _
  $region6: #{attention_block.1} parent=0 // loop_footer
    %s18 = sadd.s32 1, %s14
  $region7: #{attention_block.1} parent=0 // loop_footer_branch
    %13 = sbr.rel target = $region3
  $region8: #{attention_block.1} parent=0 // loop_exit
    _

</llo_original>
